<compile_context>
chip_gen: v5e
topology: v5e:2x2
jax: 0.10.0
libtpu: 0.0.40
codegen_flags: <defaults>
</compile_context>

<pallas_src>
import functools

import jax
import jax.numpy as jnp
from jax.experimental import pallas as pl
from jax.experimental.pallas import tpu as pltpu


def _adaptive_bounds(in_size: int, out_size: int, idx: int):
    """PyTorch adaptive pooling window bounds for output index `idx`."""
    start = (idx * in_size) // out_size
    end = -(-((idx + 1) * in_size) // out_size)  # ceil
    return start, end


def _round_up(v: int, m: int) -> int:
    return -(-v // m) * m


def conv_head_kernel(x_ref, cw_ref, cb_ref, alpha_ref, fcw_ref, fcb_ref,
                     out_ref, *, ho: int, wo_pad: int, pool_size: int,
                     out_w: int):
    # x_ref    : (Nb*Ho*Wo_pad, K)   im2col patches for this batch block (row=(b,h,w))
    # cw_ref   : (K, Cout)           conv weight as a matmul matrix
    # cb_ref   : (1, Cout)           conv bias
    # alpha_ref: (1, 1)              SDNPool alpha
    # fcw_ref  : (P*P*Cout, NC_pad)  FC weight, rows in (i, j, c) order, classes padded
    # fcb_ref  : (1, NC_pad)         FC bias (padded)
    # out_ref  : (Nb, NC_pad)        logits for this batch block (lane-dense store)
    nb = out_ref.shape[0]
    cout = cw_ref.shape[1]
    P = pool_size

    # ---- relu + conv: one big MXU matmul for the whole batch block ----
    x = jnp.maximum(x_ref[...], 0.0)                              # (Nb*Ho*Wo_pad, K)
    conv = (jnp.dot(x, cw_ref[...], preferred_element_type=jnp.float32)
            + cb_ref[...])                                        # (Nb*Ho*Wo_pad, Cout)
    # Wo_pad is a multiple of 8, so this leading-dim split only regroups whole
    # sublane blocks (no data movement at the vreg level).
    conv3 = conv.reshape(nb, ho * wo_pad, cout)                   # (Nb, Ho*Wo_pad, Cout)

    # ---- adaptive max/avg pooling, batched over the block ----
    max_cols = []
    avg_cols = []
    for i in range(P):
        hs, he = _adaptive_bounds(ho, P, i)
        # Row-band max / sum, vectorized over w and channels; shared by all P
        # column windows of this band.  Row slices are sublane-aligned
        # (multiples of Wo_pad, itself a multiple of 8).
        band_max = conv3[:, hs * wo_pad:hs * wo_pad + wo_pad, :]  # (Nb, Wo_pad, Cout)
        band_sum = band_max
        for h in range(hs + 1, he):
            row = conv3[:, h * wo_pad:h * wo_pad + wo_pad, :]
            band_max = jnp.maximum(band_max, row)
            band_sum = band_sum + row
        for j in range(P):
            ws, we = _adaptive_bounds(out_w, P, j)                # true Wo, never pad cols
            mx = jnp.max(band_max[:, ws:we, :], axis=1)           # (Nb, Cout)
            sm = jnp.sum(band_sum[:, ws:we, :], axis=1)           # (Nb, Cout)
            max_cols.append(mx)
            avg_cols.append(sm * (1.0 / float((he - hs) * (we - ws))))

    # (i, j, c)-ordered pooled features for the whole block; mix once.
    pooled_max = jnp.concatenate(max_cols, axis=-1)               # (Nb, P*P*Cout)
    pooled_avg = jnp.concatenate(avg_cols, axis=-1)               # (Nb, P*P*Cout)
    alpha = alpha_ref[...]                                        # (1, 1)
    pooled = alpha * pooled_max + (1.0 - alpha) * pooled_avg      # (Nb, P*P*Cout)

    # ---- FC: one matmul, lane-dense (padded) output store ----
    out_ref[...] = (jnp.dot(pooled, fcw_ref[...],
                            preferred_element_type=jnp.float32)
                    + fcb_ref[...])                               # (Nb, NC_pad)


def im2col(x, kh=3, kw=3, stride=2):
    """NCHW -> (N, Ho, Wo, Cin*kh*kw); feature index = c*kh*kw + dh*kw + dw."""
    N, C, H, W = x.shape
    Ho = (H - kh) // stride + 1
    Wo = (W - kw) // stride + 1
    cols = []
    for dh in range(kh):
        for dw in range(kw):
            cols.append(x[:, :, dh:dh + stride * Ho:stride,
                          dw:dw + stride * Wo:stride])            # (N, C, Ho, Wo)
    p = jnp.stack(cols, axis=2)                                   # (N, C, kh*kw, Ho, Wo)
    p = jnp.transpose(p, (0, 3, 4, 1, 2))                         # (N, Ho, Wo, C, kh*kw)
    return p.reshape(N, Ho, Wo, C * kh * kw), Ho, Wo


@functools.partial(jax.jit, static_argnames=("pool_size", "block_n"))
def conv_head_forward(x, conv_w, conv_b, alpha, fc_w, fc_b, pool_size=4,
                      block_n=None):
    N, Cin, H, W = x.shape
    Cout = conv_w.shape[0]
    NC = fc_w.shape[0]
    P = pool_size

    patches, Ho, Wo = im2col(x)                                   # (N, Ho, Wo, K)
    K = patches.shape[-1]
    Wo_pad = _round_up(Wo, 8)   # sublane-align conv rows -> layout-free in-kernel reshape

    # Batch blocking: fill the MXU M dim and amortize per-grid-step overhead.
    if block_n is None:
        block_n = min(N, max(1, -(-256 // (Ho * Wo_pad))))
    if block_n < N:
        block_n = min(_round_up(block_n, 8), N)   # keep dense (8-aligned) output blocks
    n_pad = _round_up(N, block_n)

    patches = jnp.pad(patches,
                      ((0, n_pad - N), (0, 0), (0, Wo_pad - Wo), (0, 0)))
    patches2d = patches.reshape(n_pad * Ho * Wo_pad, K)           # row = (b, h, w)

    cw_mat = conv_w.reshape(Cout, K).T                            # (K, Cout)
    cb = conv_b.reshape(1, Cout)
    alpha_arr = jnp.full((1, 1), alpha, jnp.float32)

    # PyTorch flattens (N, Cout, P, P) as c*P*P + i*P + j; the kernel emits pooled
    # features in (i, j, c) order, so permute + flatten the FC weight to match, and
    # pad the class dim to a multiple of 128 for lane-dense stores.
    NC_pad = _round_up(NC, 128)
    fcw = jnp.transpose(fc_w.reshape(NC, Cout, P, P), (2, 3, 1, 0))   # (P, P, Cout, NC)
    fcw = fcw.reshape(P * P * Cout, NC)
    fcw = jnp.pad(fcw, ((0, 0), (0, NC_pad - NC)))
    fcb = jnp.pad(fc_b.reshape(1, NC), ((0, 0), (0, NC_pad - NC)))

    rows_per_block = block_n * Ho * Wo_pad
    kernel = functools.partial(conv_head_kernel, ho=Ho, wo_pad=Wo_pad,
                               pool_size=P, out_w=Wo)

    out = pl.pallas_call(
        kernel,
        out_shape=jax.ShapeDtypeStruct((n_pad, NC_pad), jnp.float32),
        grid=(n_pad // block_n,),
        in_specs=[
            pl.BlockSpec((rows_per_block, K), lambda n: (n, 0)),
            pl.BlockSpec((K, Cout), lambda n: (0, 0)),
            pl.BlockSpec((1, Cout), lambda n: (0, 0)),
            pl.BlockSpec((1, 1), lambda n: (0, 0)),
            pl.BlockSpec((P * P * Cout, NC_pad), lambda n: (0, 0)),
            pl.BlockSpec((1, NC_pad), lambda n: (0, 0)),
        ],
        out_specs=pl.BlockSpec((block_n, NC_pad), lambda n: (n, 0)),
        compiler_params=pltpu.CompilerParams(
            dimension_semantics=("parallel",)),   # batch blocks are independent
    )(patches2d, cw_mat, cb, alpha_arr, fcw, fcb)

    return out[:N, :NC]


def conv_head_reference(x, conv_w, conv_b, alpha, fc_w, fc_b, pool_size=4):
    """Pure-JAX reference of the PyTorch forward (NCHW)."""
    P = pool_size
    xr = jnp.maximum(x, 0.0)
    y = jax.lax.conv_general_dilated(
        xr, conv_w, window_strides=(2, 2), padding="VALID",
        dimension_numbers=("NCHW", "OIHW", "NCHW"))
    y = y + conv_b[None, :, None, None]
    N, C, Ho, Wo = y.shape
    mx_rows, av_rows = [], []
    for i in range(P):
        hs, he = _adaptive_bounds(Ho, P, i)
        mx_cols, av_cols = [], []
        for j in range(P):
            ws, we = _adaptive_bounds(Wo, P, j)
            win = y[:, :, hs:he, ws:we]
            mx_cols.append(jnp.max(win, axis=(2, 3)))
            av_cols.append(jnp.mean(win, axis=(2, 3)))
        mx_rows.append(jnp.stack(mx_cols, axis=-1))
        av_rows.append(jnp.stack(av_cols, axis=-1))
    mx = jnp.stack(mx_rows, axis=-2)                              # (N, C, P, P)
    av = jnp.stack(av_rows, axis=-2)
    mixed = alpha * mx + (1 - alpha) * av
    flat = mixed.reshape(N, -1)
    return flat @ fc_w.T + fc_b


if __name__ == "__main__":
    # Small, module-consistent shapes.
    N, Cin, H, W = 2, 8, 16, 16
    Cout = Cin // 2
    pool_size = 4
    num_classes = 10

    key = jax.random.PRNGKey(0)
    k1, k2, k3, k4, k5, kx = jax.random.split(key, 6)
    conv_w = jax.random.normal(k1, (Cout, Cin, 3, 3), jnp.float32) * 0.1
    conv_b = jax.random.normal(k2, (Cout,), jnp.float32) * 0.1
    fc_w = jax.random.normal(k3, (num_classes, Cout * pool_size ** 2), jnp.float32) * 0.1
    fc_b = jax.random.normal(k4, (num_classes,), jnp.float32) * 0.1
    alpha = jax.random.uniform(k5, (), jnp.float32)               # torch.rand(1)
    x = jax.random.normal(kx, (N, Cin, H, W), jnp.float32)

    out = conv_head_forward(x, conv_w, conv_b, alpha, fc_w, fc_b, pool_size=pool_size)
    out = jax.block_until_ready(out)

    ref = conv_head_reference(x, conv_w, conv_b, alpha, fc_w, fc_b, pool_size=pool_size)
    ref = jax.block_until_ready(ref)

    assert out.shape == (N, num_classes)
    assert jnp.allclose(out, ref, rtol=2e-2, atol=2e-2), (out, ref)
    print("KERNEL_OK")
</pallas_src>

<mosaic_0001>
module attributes {stable_mosaic.version = 11 : i64} {
  func.func @conv_head_kernel(%arg0: i32, %arg1: memref<112x72xf32, #tpu.memory_space<vmem>>, %arg2: memref<72x4xf32, #tpu.memory_space<vmem>>, %arg3: memref<1x4xf32, #tpu.memory_space<vmem>>, %arg4: memref<1x1xf32, #tpu.memory_space<vmem>>, %arg5: memref<64x128xf32, #tpu.memory_space<vmem>>, %arg6: memref<1x128xf32, #tpu.memory_space<vmem>>, %arg7: memref<2x128xf32, #tpu.memory_space<vmem>>) attributes {dimension_semantics = [#tpu.dimension_semantics<parallel>], iteration_bounds = array<i64: 1>, scalar_prefetch = 0 : i64, scratch_operands = 0 : i64, tpu.core_type = #tpu.core_type<tc>, window_params = [{transform_indices = @transform_0, window_bounds = array<i64: 112, 72>}, {pipeline_mode = #tpu.pipeline_mode<synchronous>, transform_indices = @transform_1, window_bounds = array<i64: 72, 4>}, {pipeline_mode = #tpu.pipeline_mode<synchronous>, transform_indices = @transform_2, window_bounds = array<i64: 1, 4>}, {pipeline_mode = #tpu.pipeline_mode<synchronous>, transform_indices = @transform_3, window_bounds = array<i64: 1, 1>}, {pipeline_mode = #tpu.pipeline_mode<synchronous>, transform_indices = @transform_4, window_bounds = array<i64: 64, 128>}, {pipeline_mode = #tpu.pipeline_mode<synchronous>, transform_indices = @transform_5, window_bounds = array<i64: 1, 128>}, {transform_indices = @transform_6, window_bounds = array<i64: 2, 128>}]} {
    %c0 = arith.constant 0 : index
    %c0_0 = arith.constant 0 : index
    %0 = vector.load %arg1[%c0, %c0_0] : memref<112x72xf32, #tpu.memory_space<vmem>>, vector<112x72xf32>
    %cst = arith.constant 0.000000e+00 : f32
    %1 = vector.broadcast %cst : f32 to vector<112x72xf32>
    %2 = arith.maximumf %0, %1 : vector<112x72xf32>
    %c0_1 = arith.constant 0 : index
    %c0_2 = arith.constant 0 : index
    %3 = vector.load %arg2[%c0_1, %c0_2] : memref<72x4xf32, #tpu.memory_space<vmem>>, vector<72x4xf32>
    %cst_3 = arith.constant dense<0.000000e+00> : vector<112x4xf32>
    %4 = tpu.matmul %2, %3, %cst_3 {dimension_numbers = #tpu.dot_dimension_numbers<[1], [0], [0], [1], [0, 0, 1, 1], [], []>} : vector<112x72xf32>, vector<72x4xf32>, vector<112x4xf32> -> vector<112x4xf32>
    %c0_4 = arith.constant 0 : index
    %c0_5 = arith.constant 0 : index
    %5 = vector.load %arg3[%c0_4, %c0_5] : memref<1x4xf32, #tpu.memory_space<vmem>>, vector<1x4xf32>
    %6 = vector.broadcast %5 : vector<1x4xf32> to vector<112x4xf32>
    %7 = arith.addf %4, %6 : vector<112x4xf32>
    %8 = vector.shape_cast %7 : vector<112x4xf32> to vector<2x56x4xf32>
    %9 = vector.extract_strided_slice %8 {offsets = [0, 0, 0], sizes = [2, 8, 4], strides = [1, 1, 1]} : vector<2x56x4xf32> to vector<2x8x4xf32>
    %10 = vector.extract_strided_slice %8 {offsets = [0, 8, 0], sizes = [2, 8, 4], strides = [1, 1, 1]} : vector<2x56x4xf32> to vector<2x8x4xf32>
    %11 = arith.maximumf %9, %10 : vector<2x8x4xf32>
    %12 = arith.addf %9, %10 : vector<2x8x4xf32>
    %13 = vector.extract_strided_slice %11 {offsets = [0, 0, 0], sizes = [2, 2, 4], strides = [1, 1, 1]} : vector<2x8x4xf32> to vector<2x2x4xf32>
    %cst_6 = arith.constant dense<0xFF800000> : vector<2x4xf32>
    %14 = vector.multi_reduction <maximumf>, %13, %cst_6 [1] : vector<2x2x4xf32> to vector<2x4xf32>
    %15 = vector.extract_strided_slice %12 {offsets = [0, 0, 0], sizes = [2, 2, 4], strides = [1, 1, 1]} : vector<2x8x4xf32> to vector<2x2x4xf32>
    %cst_7 = arith.constant dense<0.000000e+00> : vector<2x4xf32>
    %16 = vector.multi_reduction <add>, %15, %cst_7 [1] : vector<2x2x4xf32> to vector<2x4xf32>
    %cst_8 = arith.constant 2.500000e-01 : f32
    %17 = vector.broadcast %cst_8 : f32 to vector<2x4xf32>
    %18 = arith.mulf %16, %17 : vector<2x4xf32>
    %19 = vector.extract_strided_slice %11 {offsets = [0, 1, 0], sizes = [2, 3, 4], strides = [1, 1, 1]} : vector<2x8x4xf32> to vector<2x3x4xf32>
    %cst_9 = arith.constant dense<0xFF800000> : vector<2x4xf32>
    %20 = vector.multi_reduction <maximumf>, %19, %cst_9 [1] : vector<2x3x4xf32> to vector<2x4xf32>
    %21 = vector.extract_strided_slice %12 {offsets = [0, 1, 0], sizes = [2, 3, 4], strides = [1, 1, 1]} : vector<2x8x4xf32> to vector<2x3x4xf32>
    %cst_10 = arith.constant dense<0.000000e+00> : vector<2x4xf32>
    %22 = vector.multi_reduction <add>, %21, %cst_10 [1] : vector<2x3x4xf32> to vector<2x4xf32>
    %cst_11 = arith.constant 0.166666672 : f32
    %23 = vector.broadcast %cst_11 : f32 to vector<2x4xf32>
    %24 = arith.mulf %22, %23 : vector<2x4xf32>
    %25 = vector.extract_strided_slice %11 {offsets = [0, 3, 0], sizes = [2, 3, 4], strides = [1, 1, 1]} : vector<2x8x4xf32> to vector<2x3x4xf32>
    %cst_12 = arith.constant dense<0xFF800000> : vector<2x4xf32>
    %26 = vector.multi_reduction <maximumf>, %25, %cst_12 [1] : vector<2x3x4xf32> to vector<2x4xf32>
    %27 = vector.extract_strided_slice %12 {offsets = [0, 3, 0], sizes = [2, 3, 4], strides = [1, 1, 1]} : vector<2x8x4xf32> to vector<2x3x4xf32>
    %cst_13 = arith.constant dense<0.000000e+00> : vector<2x4xf32>
    %28 = vector.multi_reduction <add>, %27, %cst_13 [1] : vector<2x3x4xf32> to vector<2x4xf32>
    %cst_14 = arith.constant 0.166666672 : f32
    %29 = vector.broadcast %cst_14 : f32 to vector<2x4xf32>
    %30 = arith.mulf %28, %29 : vector<2x4xf32>
    %31 = vector.extract_strided_slice %11 {offsets = [0, 5, 0], sizes = [2, 2, 4], strides = [1, 1, 1]} : vector<2x8x4xf32> to vector<2x2x4xf32>
    %cst_15 = arith.constant dense<0xFF800000> : vector<2x4xf32>
    %32 = vector.multi_reduction <maximumf>, %31, %cst_15 [1] : vector<2x2x4xf32> to vector<2x4xf32>
    %33 = vector.extract_strided_slice %12 {offsets = [0, 5, 0], sizes = [2, 2, 4], strides = [1, 1, 1]} : vector<2x8x4xf32> to vector<2x2x4xf32>
    %cst_16 = arith.constant dense<0.000000e+00> : vector<2x4xf32>
    %34 = vector.multi_reduction <add>, %33, %cst_16 [1] : vector<2x2x4xf32> to vector<2x4xf32>
    %cst_17 = arith.constant 2.500000e-01 : f32
    %35 = vector.broadcast %cst_17 : f32 to vector<2x4xf32>
    %36 = arith.mulf %34, %35 : vector<2x4xf32>
    %37 = vector.extract_strided_slice %8 {offsets = [0, 8, 0], sizes = [2, 8, 4], strides = [1, 1, 1]} : vector<2x56x4xf32> to vector<2x8x4xf32>
    %38 = vector.extract_strided_slice %8 {offsets = [0, 16, 0], sizes = [2, 8, 4], strides = [1, 1, 1]} : vector<2x56x4xf32> to vector<2x8x4xf32>
    %39 = arith.maximumf %37, %38 : vector<2x8x4xf32>
    %40 = arith.addf %37, %38 : vector<2x8x4xf32>
    %41 = vector.extract_strided_slice %8 {offsets = [0, 24, 0], sizes = [2, 8, 4], strides = [1, 1, 1]} : vector<2x56x4xf32> to vector<2x8x4xf32>
    %42 = arith.maximumf %39, %41 : vector<2x8x4xf32>
    %43 = arith.addf %40, %41 : vector<2x8x4xf32>
    %44 = vector.extract_strided_slice %42 {offsets = [0, 0, 0], sizes = [2, 2, 4], strides = [1, 1, 1]} : vector<2x8x4xf32> to vector<2x2x4xf32>
    %cst_18 = arith.constant dense<0xFF800000> : vector<2x4xf32>
    %45 = vector.multi_reduction <maximumf>, %44, %cst_18 [1] : vector<2x2x4xf32> to vector<2x4xf32>
    %46 = vector.extract_strided_slice %43 {offsets = [0, 0, 0], sizes = [2, 2, 4], strides = [1, 1, 1]} : vector<2x8x4xf32> to vector<2x2x4xf32>
    %cst_19 = arith.constant dense<0.000000e+00> : vector<2x4xf32>
    %47 = vector.multi_reduction <add>, %46, %cst_19 [1] : vector<2x2x4xf32> to vector<2x4xf32>
    %cst_20 = arith.constant 0.166666672 : f32
    %48 = vector.broadcast %cst_20 : f32 to vector<2x4xf32>
    %49 = arith.mulf %47, %48 : vector<2x4xf32>
    %50 = vector.extract_strided_slice %42 {offsets = [0, 1, 0], sizes = [2, 3, 4], strides = [1, 1, 1]} : vector<2x8x4xf32> to vector<2x3x4xf32>
    %cst_21 = arith.constant dense<0xFF800000> : vector<2x4xf32>
    %51 = vector.multi_reduction <maximumf>, %50, %cst_21 [1] : vector<2x3x4xf32> to vector<2x4xf32>
    %52 = vector.extract_strided_slice %43 {offsets = [0, 1, 0], sizes = [2, 3, 4], strides = [1, 1, 1]} : vector<2x8x4xf32> to vector<2x3x4xf32>
    %cst_22 = arith.constant dense<0.000000e+00> : vector<2x4xf32>
    %53 = vector.multi_reduction <add>, %52, %cst_22 [1] : vector<2x3x4xf32> to vector<2x4xf32>
    %cst_23 = arith.constant 0.111111112 : f32
    %54 = vector.broadcast %cst_23 : f32 to vector<2x4xf32>
    %55 = arith.mulf %53, %54 : vector<2x4xf32>
    %56 = vector.extract_strided_slice %42 {offsets = [0, 3, 0], sizes = [2, 3, 4], strides = [1, 1, 1]} : vector<2x8x4xf32> to vector<2x3x4xf32>
    %cst_24 = arith.constant dense<0xFF800000> : vector<2x4xf32>
    %57 = vector.multi_reduction <maximumf>, %56, %cst_24 [1] : vector<2x3x4xf32> to vector<2x4xf32>
    %58 = vector.extract_strided_slice %43 {offsets = [0, 3, 0], sizes = [2, 3, 4], strides = [1, 1, 1]} : vector<2x8x4xf32> to vector<2x3x4xf32>
    %cst_25 = arith.constant dense<0.000000e+00> : vector<2x4xf32>
    %59 = vector.multi_reduction <add>, %58, %cst_25 [1] : vector<2x3x4xf32> to vector<2x4xf32>
    %cst_26 = arith.constant 0.111111112 : f32
    %60 = vector.broadcast %cst_26 : f32 to vector<2x4xf32>
    %61 = arith.mulf %59, %60 : vector<2x4xf32>
    %62 = vector.extract_strided_slice %42 {offsets = [0, 5, 0], sizes = [2, 2, 4], strides = [1, 1, 1]} : vector<2x8x4xf32> to vector<2x2x4xf32>
    %cst_27 = arith.constant dense<0xFF800000> : vector<2x4xf32>
    %63 = vector.multi_reduction <maximumf>, %62, %cst_27 [1] : vector<2x2x4xf32> to vector<2x4xf32>
    %64 = vector.extract_strided_slice %43 {offsets = [0, 5, 0], sizes = [2, 2, 4], strides = [1, 1, 1]} : vector<2x8x4xf32> to vector<2x2x4xf32>
    %cst_28 = arith.constant dense<0.000000e+00> : vector<2x4xf32>
    %65 = vector.multi_reduction <add>, %64, %cst_28 [1] : vector<2x2x4xf32> to vector<2x4xf32>
    %cst_29 = arith.constant 0.166666672 : f32
    %66 = vector.broadcast %cst_29 : f32 to vector<2x4xf32>
    %67 = arith.mulf %65, %66 : vector<2x4xf32>
    %68 = vector.extract_strided_slice %8 {offsets = [0, 24, 0], sizes = [2, 8, 4], strides = [1, 1, 1]} : vector<2x56x4xf32> to vector<2x8x4xf32>
    %69 = vector.extract_strided_slice %8 {offsets = [0, 32, 0], sizes = [2, 8, 4], strides = [1, 1, 1]} : vector<2x56x4xf32> to vector<2x8x4xf32>
    %70 = arith.maximumf %68, %69 : vector<2x8x4xf32>
    %71 = arith.addf %68, %69 : vector<2x8x4xf32>
    %72 = vector.extract_strided_slice %8 {offsets = [0, 40, 0], sizes = [2, 8, 4], strides = [1, 1, 1]} : vector<2x56x4xf32> to vector<2x8x4xf32>
    %73 = arith.maximumf %70, %72 : vector<2x8x4xf32>
    %74 = arith.addf %71, %72 : vector<2x8x4xf32>
    %75 = vector.extract_strided_slice %73 {offsets = [0, 0, 0], sizes = [2, 2, 4], strides = [1, 1, 1]} : vector<2x8x4xf32> to vector<2x2x4xf32>
    %cst_30 = arith.constant dense<0xFF800000> : vector<2x4xf32>
    %76 = vector.multi_reduction <maximumf>, %75, %cst_30 [1] : vector<2x2x4xf32> to vector<2x4xf32>
    %77 = vector.extract_strided_slice %74 {offsets = [0, 0, 0], sizes = [2, 2, 4], strides = [1, 1, 1]} : vector<2x8x4xf32> to vector<2x2x4xf32>
    %cst_31 = arith.constant dense<0.000000e+00> : vector<2x4xf32>
    %78 = vector.multi_reduction <add>, %77, %cst_31 [1] : vector<2x2x4xf32> to vector<2x4xf32>
    %cst_32 = arith.constant 0.166666672 : f32
    %79 = vector.broadcast %cst_32 : f32 to vector<2x4xf32>
    %80 = arith.mulf %78, %79 : vector<2x4xf32>
    %81 = vector.extract_strided_slice %73 {offsets = [0, 1, 0], sizes = [2, 3, 4], strides = [1, 1, 1]} : vector<2x8x4xf32> to vector<2x3x4xf32>
    %cst_33 = arith.constant dense<0xFF800000> : vector<2x4xf32>
    %82 = vector.multi_reduction <maximumf>, %81, %cst_33 [1] : vector<2x3x4xf32> to vector<2x4xf32>
    %83 = vector.extract_strided_slice %74 {offsets = [0, 1, 0], sizes = [2, 3, 4], strides = [1, 1, 1]} : vector<2x8x4xf32> to vector<2x3x4xf32>
    %cst_34 = arith.constant dense<0.000000e+00> : vector<2x4xf32>
    %84 = vector.multi_reduction <add>, %83, %cst_34 [1] : vector<2x3x4xf32> to vector<2x4xf32>
    %cst_35 = arith.constant 0.111111112 : f32
    %85 = vector.broadcast %cst_35 : f32 to vector<2x4xf32>
    %86 = arith.mulf %84, %85 : vector<2x4xf32>
    %87 = vector.extract_strided_slice %73 {offsets = [0, 3, 0], sizes = [2, 3, 4], strides = [1, 1, 1]} : vector<2x8x4xf32> to vector<2x3x4xf32>
    %cst_36 = arith.constant dense<0xFF800000> : vector<2x4xf32>
    %88 = vector.multi_reduction <maximumf>, %87, %cst_36 [1] : vector<2x3x4xf32> to vector<2x4xf32>
    %89 = vector.extract_strided_slice %74 {offsets = [0, 3, 0], sizes = [2, 3, 4], strides = [1, 1, 1]} : vector<2x8x4xf32> to vector<2x3x4xf32>
    %cst_37 = arith.constant dense<0.000000e+00> : vector<2x4xf32>
    %90 = vector.multi_reduction <add>, %89, %cst_37 [1] : vector<2x3x4xf32> to vector<2x4xf32>
    %cst_38 = arith.constant 0.111111112 : f32
    %91 = vector.broadcast %cst_38 : f32 to vector<2x4xf32>
    %92 = arith.mulf %90, %91 : vector<2x4xf32>
    %93 = vector.extract_strided_slice %73 {offsets = [0, 5, 0], sizes = [2, 2, 4], strides = [1, 1, 1]} : vector<2x8x4xf32> to vector<2x2x4xf32>
    %cst_39 = arith.constant dense<0xFF800000> : vector<2x4xf32>
    %94 = vector.multi_reduction <maximumf>, %93, %cst_39 [1] : vector<2x2x4xf32> to vector<2x4xf32>
    %95 = vector.extract_strided_slice %74 {offsets = [0, 5, 0], sizes = [2, 2, 4], strides = [1, 1, 1]} : vector<2x8x4xf32> to vector<2x2x4xf32>
    %cst_40 = arith.constant dense<0.000000e+00> : vector<2x4xf32>
    %96 = vector.multi_reduction <add>, %95, %cst_40 [1] : vector<2x2x4xf32> to vector<2x4xf32>
    %cst_41 = arith.constant 0.166666672 : f32
    %97 = vector.broadcast %cst_41 : f32 to vector<2x4xf32>
    %98 = arith.mulf %96, %97 : vector<2x4xf32>
    %99 = vector.extract_strided_slice %8 {offsets = [0, 40, 0], sizes = [2, 8, 4], strides = [1, 1, 1]} : vector<2x56x4xf32> to vector<2x8x4xf32>
    %100 = vector.extract_strided_slice %8 {offsets = [0, 48, 0], sizes = [2, 8, 4], strides = [1, 1, 1]} : vector<2x56x4xf32> to vector<2x8x4xf32>
    %101 = arith.maximumf %99, %100 : vector<2x8x4xf32>
    %102 = arith.addf %99, %100 : vector<2x8x4xf32>
    %103 = vector.extract_strided_slice %101 {offsets = [0, 0, 0], sizes = [2, 2, 4], strides = [1, 1, 1]} : vector<2x8x4xf32> to vector<2x2x4xf32>
    %cst_42 = arith.constant dense<0xFF800000> : vector<2x4xf32>
    %104 = vector.multi_reduction <maximumf>, %103, %cst_42 [1] : vector<2x2x4xf32> to vector<2x4xf32>
    %105 = vector.extract_strided_slice %102 {offsets = [0, 0, 0], sizes = [2, 2, 4], strides = [1, 1, 1]} : vector<2x8x4xf32> to vector<2x2x4xf32>
    %cst_43 = arith.constant dense<0.000000e+00> : vector<2x4xf32>
    %106 = vector.multi_reduction <add>, %105, %cst_43 [1] : vector<2x2x4xf32> to vector<2x4xf32>
    %cst_44 = arith.constant 2.500000e-01 : f32
    %107 = vector.broadcast %cst_44 : f32 to vector<2x4xf32>
    %108 = arith.mulf %106, %107 : vector<2x4xf32>
    %109 = vector.extract_strided_slice %101 {offsets = [0, 1, 0], sizes = [2, 3, 4], strides = [1, 1, 1]} : vector<2x8x4xf32> to vector<2x3x4xf32>
    %cst_45 = arith.constant dense<0xFF800000> : vector<2x4xf32>
    %110 = vector.multi_reduction <maximumf>, %109, %cst_45 [1] : vector<2x3x4xf32> to vector<2x4xf32>
    %111 = vector.extract_strided_slice %102 {offsets = [0, 1, 0], sizes = [2, 3, 4], strides = [1, 1, 1]} : vector<2x8x4xf32> to vector<2x3x4xf32>
    %cst_46 = arith.constant dense<0.000000e+00> : vector<2x4xf32>
    %112 = vector.multi_reduction <add>, %111, %cst_46 [1] : vector<2x3x4xf32> to vector<2x4xf32>
    %cst_47 = arith.constant 0.166666672 : f32
    %113 = vector.broadcast %cst_47 : f32 to vector<2x4xf32>
    %114 = arith.mulf %112, %113 : vector<2x4xf32>
    %115 = vector.extract_strided_slice %101 {offsets = [0, 3, 0], sizes = [2, 3, 4], strides = [1, 1, 1]} : vector<2x8x4xf32> to vector<2x3x4xf32>
    %cst_48 = arith.constant dense<0xFF800000> : vector<2x4xf32>
    %116 = vector.multi_reduction <maximumf>, %115, %cst_48 [1] : vector<2x3x4xf32> to vector<2x4xf32>
    %117 = vector.extract_strided_slice %102 {offsets = [0, 3, 0], sizes = [2, 3, 4], strides = [1, 1, 1]} : vector<2x8x4xf32> to vector<2x3x4xf32>
    %cst_49 = arith.constant dense<0.000000e+00> : vector<2x4xf32>
    %118 = vector.multi_reduction <add>, %117, %cst_49 [1] : vector<2x3x4xf32> to vector<2x4xf32>
    %cst_50 = arith.constant 0.166666672 : f32
    %119 = vector.broadcast %cst_50 : f32 to vector<2x4xf32>
    %120 = arith.mulf %118, %119 : vector<2x4xf32>
    %121 = vector.extract_strided_slice %101 {offsets = [0, 5, 0], sizes = [2, 2, 4], strides = [1, 1, 1]} : vector<2x8x4xf32> to vector<2x2x4xf32>
    %cst_51 = arith.constant dense<0xFF800000> : vector<2x4xf32>
    %122 = vector.multi_reduction <maximumf>, %121, %cst_51 [1] : vector<2x2x4xf32> to vector<2x4xf32>
    %123 = vector.extract_strided_slice %102 {offsets = [0, 5, 0], sizes = [2, 2, 4], strides = [1, 1, 1]} : vector<2x8x4xf32> to vector<2x2x4xf32>
    %cst_52 = arith.constant dense<0.000000e+00> : vector<2x4xf32>
    %124 = vector.multi_reduction <add>, %123, %cst_52 [1] : vector<2x2x4xf32> to vector<2x4xf32>
    %cst_53 = arith.constant 2.500000e-01 : f32
    %125 = vector.broadcast %cst_53 : f32 to vector<2x4xf32>
    %126 = arith.mulf %124, %125 : vector<2x4xf32>
    %127 = tpu.concatenate %14, %20, %26, %32, %45, %51, %57, %63, %76, %82, %88, %94, %104, %110, %116, %122 in 1 : vector<2x4xf32>, vector<2x4xf32>, vector<2x4xf32>, vector<2x4xf32>, vector<2x4xf32>, vector<2x4xf32>, vector<2x4xf32>, vector<2x4xf32>, vector<2x4xf32>, vector<2x4xf32>, vector<2x4xf32>, vector<2x4xf32>, vector<2x4xf32>, vector<2x4xf32>, vector<2x4xf32>, vector<2x4xf32> -> vector<2x64xf32>
    %128 = tpu.concatenate %18, %24, %30, %36, %49, %55, %61, %67, %80, %86, %92, %98, %108, %114, %120, %126 in 1 : vector<2x4xf32>, vector<2x4xf32>, vector<2x4xf32>, vector<2x4xf32>, vector<2x4xf32>, vector<2x4xf32>, vector<2x4xf32>, vector<2x4xf32>, vector<2x4xf32>, vector<2x4xf32>, vector<2x4xf32>, vector<2x4xf32>, vector<2x4xf32>, vector<2x4xf32>, vector<2x4xf32>, vector<2x4xf32> -> vector<2x64xf32>
    %c0_54 = arith.constant 0 : index
    %c0_55 = arith.constant 0 : index
    %129 = vector.load %arg4[%c0_54, %c0_55] : memref<1x1xf32, #tpu.memory_space<vmem>>, vector<1x1xf32>
    %130 = vector.broadcast %129 : vector<1x1xf32> to vector<2x64xf32>
    %131 = arith.mulf %130, %127 : vector<2x64xf32>
    %cst_56 = arith.constant 1.000000e+00 : f32
    %132 = vector.broadcast %cst_56 : f32 to vector<1x1xf32>
    %133 = arith.subf %132, %129 : vector<1x1xf32>
    %134 = vector.broadcast %133 : vector<1x1xf32> to vector<2x64xf32>
    %135 = arith.mulf %134, %128 : vector<2x64xf32>
    %136 = arith.addf %131, %135 : vector<2x64xf32>
    %c0_57 = arith.constant 0 : index
    %c0_58 = arith.constant 0 : index
    %137 = vector.load %arg5[%c0_57, %c0_58] : memref<64x128xf32, #tpu.memory_space<vmem>>, vector<64x128xf32>
    %cst_59 = arith.constant dense<0.000000e+00> : vector<2x128xf32>
    %138 = tpu.matmul %136, %137, %cst_59 {dimension_numbers = #tpu.dot_dimension_numbers<[1], [0], [0], [1], [0, 0, 1, 1], [], []>} : vector<2x64xf32>, vector<64x128xf32>, vector<2x128xf32> -> vector<2x128xf32>
    %c0_60 = arith.constant 0 : index
    %c0_61 = arith.constant 0 : index
    %139 = vector.load %arg6[%c0_60, %c0_61] : memref<1x128xf32, #tpu.memory_space<vmem>>, vector<1x128xf32>
    %140 = vector.broadcast %139 : vector<1x128xf32> to vector<2x128xf32>
    %141 = arith.addf %138, %140 : vector<2x128xf32>
    %c0_62 = arith.constant 0 : index
    %c0_63 = arith.constant 0 : index
    %142 = vector.load %arg7[%c0_62, %c0_63] : memref<2x128xf32, #tpu.memory_space<vmem>>, vector<2x128xf32>
    tpu.vector_store %arg7[%c0_62, %c0_63], %141 {strides = array<i32>} : memref<2x128xf32, #tpu.memory_space<vmem>>, vector<2x128xf32>,
    return
  }
  func.func @transform_0(%arg0: i32) -> (i32, i32) {
    %c0_i32 = arith.constant 0 : i32
    %c0_i32_0 = arith.constant 0 : i32
    return %arg0, %c0_i32 : i32, i32
  }
  func.func @transform_1(%arg0: i32) -> (i32, i32) {
    %c0_i32 = arith.constant 0 : i32
    %c0_i32_0 = arith.constant 0 : i32
    %c0_i32_1 = arith.constant 0 : i32
    return %c0_i32, %c0_i32_0 : i32, i32
  }
  func.func @transform_2(%arg0: i32) -> (i32, i32) {
    %c0_i32 = arith.constant 0 : i32
    %c0_i32_0 = arith.constant 0 : i32
    %c0_i32_1 = arith.constant 0 : i32
    return %c0_i32, %c0_i32_0 : i32, i32
  }
  func.func @transform_3(%arg0: i32) -> (i32, i32) {
    %c0_i32 = arith.constant 0 : i32
    %c0_i32_0 = arith.constant 0 : i32
    %c0_i32_1 = arith.constant 0 : i32
    return %c0_i32, %c0_i32_0 : i32, i32
  }
  func.func @transform_4(%arg0: i32) -> (i32, i32) {
    %c0_i32 = arith.constant 0 : i32
    %c0_i32_0 = arith.constant 0 : i32
    %c0_i32_1 = arith.constant 0 : i32
    return %c0_i32, %c0_i32_0 : i32, i32
  }
  func.func @transform_5(%arg0: i32) -> (i32, i32) {
    %c0_i32 = arith.constant 0 : i32
    %c0_i32_0 = arith.constant 0 : i32
    %c0_i32_1 = arith.constant 0 : i32
    return %c0_i32, %c0_i32_0 : i32, i32
  }
  func.func @transform_6(%arg0: i32) -> (i32, i32) {
    %c0_i32 = arith.constant 0 : i32
    %c0_i32_0 = arith.constant 0 : i32
    return %arg0, %c0_i32 : i32, i32
  }
}

</mosaic_0001>

<llo_original>
// kernel: conv_head_forward.1
$region0: #{conv_head_forward.1}
  #allocation0 [shape = 'u32[]', space=smem, size = 0x4, offset = 0x4, fixed_abs, tag = 'smem constant byte address 0x4 - core index']
  #allocation1 [shape = 'u32[72,128]{1,0:T(1,128)}', space=vmem, size = 0x9000, scoped, tag = 'internal scratch']
  #allocation2 [shape = 'f32[1,1]{1,0:T(1,128)S(1)}', space=vmem, size = 0x200, scoped, tag = 'scoped memory for conv_head_forward.1']
  %s0 = inlined_call_operand.vmem [shape: f32[112,72], index: 0, kind: input, shape index: {}]
  %s1 = inlined_call_operand.vmem [shape: f32[72,4], index: 1, kind: input, shape index: {}]
  %s2 = inlined_call_operand.vmem [shape: f32[1,4], index: 2, kind: input, shape index: {}]
  %s3 = inlined_call_operand.<no memory space> [shape: f32[1,1], index: 3, kind: input, shape index: {}]
  %s4 = inlined_call_operand.vmem [shape: f32[64,128], index: 4, kind: input, shape index: {}]
  %s5 = inlined_call_operand.vmem [shape: f32[1,128], index: 5, kind: input, shape index: {}]
  %s6 = inlined_call_operand.hbm [shape: f32[2,128], index: 6, kind: output, shape index: {}]
  %s7 = sld [smem:[#allocation0]]
  $region34: #{conv_head_forward.1} parent=0
    _
  %s9 = ssub.s32 1, %s7
  %s10 = scalar_select 0, %s9, %s7
  %v11 = vstv %s3
  %12 = vst [vmem:[#allocation2] sm:$0x1] %v11
  $region1: #{conv_head_forward.1} parent=0
    #allocation3 [shape = 'u8[1024]{0}', space=vmem, size = 0x400, scoped, tag = 'output window, operand 0, single buffered']
    #allocation4 [shape = 's32[1]{0}', space=sflag, size = 0x4, scoped, tag = 'scoped memory for conv_head_forward.1']
    %13 = vsyncpa [#allocation4], 0
    // Predicated region
    $region2: #{conv_head_forward.1} parent=1 // pred_check
      _
    $region3: #{conv_head_forward.1} parent=1 // pred_check_branch
      %15 = sbr.rel (0) target = $region5
    $region4: #{conv_head_forward.1} parent=1 // pred_region
      _
    $region5: #{conv_head_forward.1} parent=1 // pred_fallthru
      _
    // Predicated region
    $region6: #{conv_head_forward.1} parent=1 // pred_check
      _
    $region7: #{conv_head_forward.1} parent=1 // pred_check_branch
      %17 = sbr.rel (0) target = $region9
    $region8: #{conv_head_forward.1} parent=1 // pred_region
      _
    $region9: #{conv_head_forward.1} parent=1 // pred_fallthru
      _
    // Predicated region
    $region10: #{conv_head_forward.1} parent=1 // pred_check
      _
    $region11: #{conv_head_forward.1} parent=1 // pred_check_branch
      %19 = sbr.rel (0) target = $region13
    $region12: #{conv_head_forward.1} parent=1 // pred_region
      _
    $region13: #{conv_head_forward.1} parent=1 // pred_fallthru
      _
    // Predicated region
    $region14: #{conv_head_forward.1} parent=1 // pred_check
      _
    $region15: #{conv_head_forward.1} parent=1 // pred_check_branch
      %21 = sbr.rel (0) target = $region17
    $region16: #{conv_head_forward.1} parent=1 // pred_region
      _
    $region17: #{conv_head_forward.1} parent=1 // pred_fallthru
      _
    // Predicated region
    $region18: #{conv_head_forward.1} parent=1 // pred_check
      _
    $region19: #{conv_head_forward.1} parent=1 // pred_check_branch
      %23 = sbr.rel (0) target = $region21
    $region20: #{conv_head_forward.1} parent=1 // pred_region
      _
    $region21: #{conv_head_forward.1} parent=1 // pred_fallthru
      _
    // Predicated region
    $region22: #{conv_head_forward.1} parent=1 // pred_check
      _
    $region23: #{conv_head_forward.1} parent=1 // pred_check_branch
      %25 = sbr.rel (0) target = $region25
    $region24: #{conv_head_forward.1} parent=1 // pred_region
      _
    $region25: #{conv_head_forward.1} parent=1 // pred_fallthru
      _
    %v26 = vld [vmem:[%s0] sm:$0xff]
    %v27 = vld [vmem:[%s0 + $0x8] sm:$0xff]
    %v28 = vld [vmem:[%s0 + $0x10] sm:$0xff]
    %v29 = vld [vmem:[%s0 + $0x18] sm:$0xff]
    %v30 = vld [vmem:[%s0 + $0x20] sm:$0xff]
    %v31 = vld [vmem:[%s0 + $0x28] sm:$0xff]
    %v32 = vld [vmem:[%s0 + $0x30] sm:$0xff]
    %v33 = vld [vmem:[%s0 + $0x38] sm:$0xff]
    %v34 = vld [vmem:[%s0 + $0x40] sm:$0xff]
    %v35 = vld [vmem:[%s0 + $0x48] sm:$0xff]
    %v36 = vld [vmem:[%s0 + $0x50] sm:$0xff]
    %v37 = vld [vmem:[%s0 + $0x58] sm:$0xff]
    %v38 = vld [vmem:[%s0 + $0x60] sm:$0xff]
    %v39 = vld [vmem:[%s0 + $0x68] sm:$0xff]
    %v40 = vmax.f32 %v26, 0.0
    %v41 = vmax.f32 %v27, 0.0
    %v42 = vmax.f32 %v28, 0.0
    %v43 = vmax.f32 %v29, 0.0
    %v44 = vmax.f32 %v30, 0.0
    %v45 = vmax.f32 %v31, 0.0
    %v46 = vmax.f32 %v32, 0.0
    %v47 = vmax.f32 %v33, 0.0
    %v48 = vmax.f32 %v34, 0.0
    %v49 = vmax.f32 %v35, 0.0
    %v50 = vmax.f32 %v36, 0.0
    %v51 = vmax.f32 %v37, 0.0
    %v52 = vmax.f32 %v38, 0.0
    %v53 = vmax.f32 %v39, 0.0
    %v54 = vld [vmem:[%s1] sm:$0xff]
    %v55 = vld [vmem:[%s1 + $0x8] sm:$0xff]
    %v56 = vld [vmem:[%s1 + $0x10] sm:$0xff]
    %v57 = vld [vmem:[%s1 + $0x18] sm:$0xff]
    %v58 = vld [vmem:[%s1 + $0x20] sm:$0xff]
    %v59 = vld [vmem:[%s1 + $0x28] sm:$0xff]
    %v60 = vld [vmem:[%s1 + $0x30] sm:$0xff]
    %v61 = vld [vmem:[%s1 + $0x38] sm:$0xff]
    %v62 = vld [vmem:[%s1 + $0x40] sm:$0xff]
    %v63 = vld [vmem:[%s2] sm:$0x1]
    %v65 = vperm.slane %v63, 0
    %vm67 = vcmask 588800
    %v69 = vsel %vm67, %v40, 0
    %v72 = vsel %vm67, %v41, 0
    %v75 = vsel %vm67, %v42, 0
    %v78 = vsel %vm67, %v43, 0
    %v81 = vsel %vm67, %v44, 0
    %v84 = vsel %vm67, %v45, 0
    %v87 = vsel %vm67, %v46, 0
    %v90 = vsel %vm67, %v47, 0
    %v93 = vsel %vm67, %v48, 0
    %v96 = vsel %vm67, %v49, 0
    %v99 = vsel %vm67, %v50, 0
    %v102 = vsel %vm67, %v51, 0
    %v105 = vsel %vm67, %v52, 0
    %v108 = vsel %vm67, %v53, 0
    %110 = vmatpush.msra.mxu0 0.0
    %111 = vmatpush.msra.mxu0 0.0
    %112 = vmatpush.msra.mxu0 0.0
    %113 = vmatpush.msra.mxu0 0.0
    %114 = vmatpush.msra.mxu0 0.0
    %115 = vmatpush.msra.mxu0 0.0
    %116 = vmatpush.msra.mxu0 0.0
    %117 = vmatpush.msra.mxu0 %v62
    %118 = vmatpush.msra.mxu0 %v61
    %119 = vmatpush.msra.mxu0 %v60
    %120 = vmatpush.msra.mxu0 %v59
    %121 = vmatpush.msra.mxu0 %v58
    %122 = vmatpush.msra.mxu0 %v57
    %123 = vmatpush.msra.mxu0 %v56
    %124 = vmatpush.msra.mxu0 %v55
    %125 = vmatpush.msra.mxu0 %v54
    %126 = vmatmul.f32.gmra.mxu0 %v69
    %v127 = vpop.f32.mrf.mxu0
    %v128 = vadd.f32 %v65, %v127
    %129 = vmatmul.f32.gmra.mxu0 %v72
    %v130 = vpop.f32.mrf.mxu0
    %v131 = vadd.f32 %v65, %v130
    %132 = vmatmul.f32.gmra.mxu0 %v75
    %v133 = vpop.f32.mrf.mxu0
    %v134 = vadd.f32 %v65, %v133
    %135 = vmatmul.f32.gmra.mxu0 %v78
    %v136 = vpop.f32.mrf.mxu0
    %v137 = vadd.f32 %v65, %v136
    %138 = vmatmul.f32.gmra.mxu0 %v81
    %v139 = vpop.f32.mrf.mxu0
    %v140 = vadd.f32 %v65, %v139
    %141 = vmatmul.f32.gmra.mxu0 %v84
    %v142 = vpop.f32.mrf.mxu0
    %v143 = vadd.f32 %v65, %v142
    %144 = vmatmul.f32.gmra.mxu0 %v87
    %v145 = vpop.f32.mrf.mxu0
    %v146 = vadd.f32 %v65, %v145
    %147 = vmatmul.f32.gmra.mxu0 %v90
    %v148 = vpop.f32.mrf.mxu0
    %v149 = vadd.f32 %v65, %v148
    %150 = vmatmul.f32.gmra.mxu0 %v93
    %v151 = vpop.f32.mrf.mxu0
    %v152 = vadd.f32 %v65, %v151
    %153 = vmatmul.f32.gmra.mxu0 %v96
    %v154 = vpop.f32.mrf.mxu0
    %v155 = vadd.f32 %v65, %v154
    %156 = vmatmul.f32.gmra.mxu0 %v99
    %v157 = vpop.f32.mrf.mxu0
    %v158 = vadd.f32 %v65, %v157
    %159 = vmatmul.f32.gmra.mxu0 %v102
    %v160 = vpop.f32.mrf.mxu0
    %v161 = vadd.f32 %v65, %v160
    %162 = vmatmul.f32.gmra.mxu0 %v105
    %v163 = vpop.f32.mrf.mxu0
    %v164 = vadd.f32 %v65, %v163
    %165 = vmatmul.f32.gmra.mxu0 %v108
    %v166 = vpop.f32.mrf.mxu0
    %v167 = vadd.f32 %v65, %v166
    %168 = vdwg.mxu0
    %v169 = vmax.f32 %v128, %v131
    %v170 = vmax.f32 %v149, %v152
    %v171 = vadd.f32 %v128, %v131
    %v172 = vadd.f32 %v149, %v152
    %vm173 = vcmask 25600
    %v174 = vsel %vm173, %v169, -inf
    %v175 = vrot.slane %v174, 4
    %v176 = vmax.f32 %v174, %v175
    %v177 = vrot.slane %v176, 2
    %v178 = vmax.f32 %v176, %v177
    %v179 = vrot.slane %v178, 1
    %v180 = vmax.f32 %v178, %v179
    %v181 = vsel %vm173, %v170, -inf
    %v182 = vrot.slane %v181, 4
    %v183 = vmax.f32 %v181, %v182
    %v184 = vrot.slane %v183, 2
    %v185 = vmax.f32 %v183, %v184
    %v186 = vrot.slane %v185, 1
    %v187 = vmax.f32 %v185, %v186
    %v188 = vsel %vm173, %v171, 0.0
    %v189 = vrot.slane %v188, 4
    %v190 = vadd.f32 %v188, %v189
    %v191 = vrot.slane %v190, 2
    %v192 = vadd.f32 %v190, %v191
    %v193 = vrot.slane %v192, 1
    %v194 = vadd.f32 %v192, %v193
    %v195 = vsel %vm173, %v172, 0.0
    %v196 = vrot.slane %v195, 4
    %v197 = vadd.f32 %v195, %v196
    %v198 = vrot.slane %v197, 2
    %v199 = vadd.f32 %v197, %v198
    %v200 = vrot.slane %v199, 1
    %v201 = vadd.f32 %v199, %v200
    %v202 = vmul.f32 %v194, 0.25
    %v203 = vmul.f32 %v201, 0.25
    %vm204 = vcmask 27649
    %v205 = vsel %vm204, %v169, -inf
    %v206 = vrot.slane %v205, 4
    %v207 = vmax.f32 %v205, %v206
    %v208 = vrot.slane %v207, 2
    %v209 = vmax.f32 %v207, %v208
    %v210 = vrot.slane %v209, 1
    %v211 = vmax.f32 %v209, %v210
    %v212 = vsel %vm204, %v170, -inf
    %v213 = vrot.slane %v212, 4
    %v214 = vmax.f32 %v212, %v213
    %v215 = vrot.slane %v214, 2
    %v216 = vmax.f32 %v214, %v215
    %v217 = vrot.slane %v216, 1
    %v218 = vmax.f32 %v216, %v217
    %v221 = vrot.slane %v171, 1
    %v222 = vrot.slane %v172, 1
    %vm225 = vcmask 26624
    %v226 = vsel %vm225, %v221, 0.0
    %v227 = vrot.slane %v226, 4
    %v228 = vadd.f32 %v226, %v227
    %v229 = vrot.slane %v228, 2
    %v230 = vadd.f32 %v228, %v229
    %v231 = vrot.slane %v230, 1
    %v232 = vadd.f32 %v230, %v231
    %v233 = vsel %vm225, %v222, 0.0
    %v234 = vrot.slane %v233, 4
    %v235 = vadd.f32 %v233, %v234
    %v236 = vrot.slane %v235, 2
    %v237 = vadd.f32 %v235, %v236
    %v238 = vrot.slane %v237, 1
    %v239 = vadd.f32 %v237, %v238
    %v240 = vmul.f32 %v232, 0.16666667
    %v241 = vmul.f32 %v239, 0.16666667
    %vm242 = vcmask 29699
    %v243 = vsel %vm242, %v169, -inf
    %v244 = vrot.slane %v243, 4
    %v245 = vmax.f32 %v243, %v244
    %v246 = vrot.slane %v245, 2
    %v247 = vmax.f32 %v245, %v246
    %v248 = vrot.slane %v247, 1
    %v249 = vmax.f32 %v247, %v248
    %v250 = vsel %vm242, %v170, -inf
    %v251 = vrot.slane %v250, 4
    %v252 = vmax.f32 %v250, %v251
    %v253 = vrot.slane %v252, 2
    %v254 = vmax.f32 %v252, %v253
    %v255 = vrot.slane %v254, 1
    %v256 = vmax.f32 %v254, %v255
    %v257 = vrot.slane %v171, 3
    %v258 = vrot.slane %v172, 3
    %v261 = vsel %vm225, %v257, 0.0
    %v262 = vrot.slane %v261, 4
    %v263 = vadd.f32 %v261, %v262
    %v264 = vrot.slane %v263, 2
    %v265 = vadd.f32 %v263, %v264
    %v266 = vrot.slane %v265, 1
    %v267 = vadd.f32 %v265, %v266
    %v268 = vsel %vm225, %v258, 0.0
    %v269 = vrot.slane %v268, 4
    %v270 = vadd.f32 %v268, %v269
    %v271 = vrot.slane %v270, 2
    %v272 = vadd.f32 %v270, %v271
    %v273 = vrot.slane %v272, 1
    %v274 = vadd.f32 %v272, %v273
    %v275 = vmul.f32 %v267, 0.16666667
    %v276 = vmul.f32 %v274, 0.16666667
    %vm277 = vcmask 30725
    %v278 = vsel %vm277, %v169, -inf
    %v279 = vrot.slane %v278, 4
    %v280 = vmax.f32 %v278, %v279
    %v281 = vrot.slane %v280, 2
    %v282 = vmax.f32 %v280, %v281
    %v283 = vrot.slane %v282, 1
    %v284 = vmax.f32 %v282, %v283
    %v285 = vsel %vm277, %v170, -inf
    %v286 = vrot.slane %v285, 4
    %v287 = vmax.f32 %v285, %v286
    %v288 = vrot.slane %v287, 2
    %v289 = vmax.f32 %v287, %v288
    %v290 = vrot.slane %v289, 1
    %v291 = vmax.f32 %v289, %v290
    %v292 = vrot.slane %v171, 5
    %v293 = vrot.slane %v172, 5
    %v296 = vsel %vm173, %v292, 0.0
    %v297 = vrot.slane %v296, 4
    %v298 = vadd.f32 %v296, %v297
    %v299 = vrot.slane %v298, 2
    %v300 = vadd.f32 %v298, %v299
    %v301 = vrot.slane %v300, 1
    %v302 = vadd.f32 %v300, %v301
    %v303 = vsel %vm173, %v293, 0.0
    %v304 = vrot.slane %v303, 4
    %v305 = vadd.f32 %v303, %v304
    %v306 = vrot.slane %v305, 2
    %v307 = vadd.f32 %v305, %v306
    %v308 = vrot.slane %v307, 1
    %v309 = vadd.f32 %v307, %v308
    %v310 = vmul.f32 %v302, 0.25
    %v311 = vmul.f32 %v309, 0.25
    %v312 = vmax.f32 %v131, %v134
    %v313 = vmax.f32 %v152, %v155
    %v314 = vadd.f32 %v131, %v134
    %v315 = vadd.f32 %v152, %v155
    %v316 = vmax.f32 %v312, %v137
    %v317 = vmax.f32 %v313, %v158
    %v318 = vadd.f32 %v314, %v137
    %v319 = vadd.f32 %v315, %v158
    %v320 = vsel %vm173, %v316, -inf
    %v321 = vrot.slane %v320, 4
    %v322 = vmax.f32 %v320, %v321
    %v323 = vrot.slane %v322, 2
    %v324 = vmax.f32 %v322, %v323
    %v325 = vrot.slane %v324, 1
    %v326 = vmax.f32 %v324, %v325
    %v327 = vsel %vm173, %v317, -inf
    %v328 = vrot.slane %v327, 4
    %v329 = vmax.f32 %v327, %v328
    %v330 = vrot.slane %v329, 2
    %v331 = vmax.f32 %v329, %v330
    %v332 = vrot.slane %v331, 1
    %v333 = vmax.f32 %v331, %v332
    %v334 = vsel %vm173, %v318, 0.0
    %v335 = vrot.slane %v334, 4
    %v336 = vadd.f32 %v334, %v335
    %v337 = vrot.slane %v336, 2
    %v338 = vadd.f32 %v336, %v337
    %v339 = vrot.slane %v338, 1
    %v340 = vadd.f32 %v338, %v339
    %v341 = vsel %vm173, %v319, 0.0
    %v342 = vrot.slane %v341, 4
    %v343 = vadd.f32 %v341, %v342
    %v344 = vrot.slane %v343, 2
    %v345 = vadd.f32 %v343, %v344
    %v346 = vrot.slane %v345, 1
    %v347 = vadd.f32 %v345, %v346
    %v348 = vmul.f32 %v340, 0.16666667
    %v349 = vmul.f32 %v347, 0.16666667
    %v350 = vsel %vm204, %v316, -inf
    %v351 = vrot.slane %v350, 4
    %v352 = vmax.f32 %v350, %v351
    %v353 = vrot.slane %v352, 2
    %v354 = vmax.f32 %v352, %v353
    %v355 = vrot.slane %v354, 1
    %v356 = vmax.f32 %v354, %v355
    %v357 = vsel %vm204, %v317, -inf
    %v358 = vrot.slane %v357, 4
    %v359 = vmax.f32 %v357, %v358
    %v360 = vrot.slane %v359, 2
    %v361 = vmax.f32 %v359, %v360
    %v362 = vrot.slane %v361, 1
    %v363 = vmax.f32 %v361, %v362
    %v366 = vrot.slane %v318, 1
    %v367 = vrot.slane %v319, 1
    %v370 = vsel %vm225, %v366, 0.0
    %v371 = vrot.slane %v370, 4
    %v372 = vadd.f32 %v370, %v371
    %v373 = vrot.slane %v372, 2
    %v374 = vadd.f32 %v372, %v373
    %v375 = vrot.slane %v374, 1
    %v376 = vadd.f32 %v374, %v375
    %v377 = vsel %vm225, %v367, 0.0
    %v378 = vrot.slane %v377, 4
    %v379 = vadd.f32 %v377, %v378
    %v380 = vrot.slane %v379, 2
    %v381 = vadd.f32 %v379, %v380
    %v382 = vrot.slane %v381, 1
    %v383 = vadd.f32 %v381, %v382
    %v384 = vmul.f32 %v376, 0.11111111
    %v385 = vmul.f32 %v383, 0.11111111
    %v386 = vsel %vm242, %v316, -inf
    %v387 = vrot.slane %v386, 4
    %v388 = vmax.f32 %v386, %v387
    %v389 = vrot.slane %v388, 2
    %v390 = vmax.f32 %v388, %v389
    %v391 = vrot.slane %v390, 1
    %v392 = vmax.f32 %v390, %v391
    %v393 = vsel %vm242, %v317, -inf
    %v394 = vrot.slane %v393, 4
    %v395 = vmax.f32 %v393, %v394
    %v396 = vrot.slane %v395, 2
    %v397 = vmax.f32 %v395, %v396
    %v398 = vrot.slane %v397, 1
    %v399 = vmax.f32 %v397, %v398
    %v400 = vrot.slane %v318, 3
    %v401 = vrot.slane %v319, 3
    %v404 = vsel %vm225, %v400, 0.0
    %v405 = vrot.slane %v404, 4
    %v406 = vadd.f32 %v404, %v405
    %v407 = vrot.slane %v406, 2
    %v408 = vadd.f32 %v406, %v407
    %v409 = vrot.slane %v408, 1
    %v410 = vadd.f32 %v408, %v409
    %v411 = vsel %vm225, %v401, 0.0
    %v412 = vrot.slane %v411, 4
    %v413 = vadd.f32 %v411, %v412
    %v414 = vrot.slane %v413, 2
    %v415 = vadd.f32 %v413, %v414
    %v416 = vrot.slane %v415, 1
    %v417 = vadd.f32 %v415, %v416
    %v418 = vmul.f32 %v410, 0.11111111
    %v419 = vmul.f32 %v417, 0.11111111
    %v420 = vsel %vm277, %v316, -inf
    %v421 = vrot.slane %v420, 4
    %v422 = vmax.f32 %v420, %v421
    %v423 = vrot.slane %v422, 2
    %v424 = vmax.f32 %v422, %v423
    %v425 = vrot.slane %v424, 1
    %v426 = vmax.f32 %v424, %v425
    %v427 = vsel %vm277, %v317, -inf
    %v428 = vrot.slane %v427, 4
    %v429 = vmax.f32 %v427, %v428
    %v430 = vrot.slane %v429, 2
    %v431 = vmax.f32 %v429, %v430
    %v432 = vrot.slane %v431, 1
    %v433 = vmax.f32 %v431, %v432
    %v434 = vrot.slane %v318, 5
    %v435 = vrot.slane %v319, 5
    %v438 = vsel %vm173, %v434, 0.0
    %v439 = vrot.slane %v438, 4
    %v440 = vadd.f32 %v438, %v439
    %v441 = vrot.slane %v440, 2
    %v442 = vadd.f32 %v440, %v441
    %v443 = vrot.slane %v442, 1
    %v444 = vadd.f32 %v442, %v443
    %v445 = vsel %vm173, %v435, 0.0
    %v446 = vrot.slane %v445, 4
    %v447 = vadd.f32 %v445, %v446
    %v448 = vrot.slane %v447, 2
    %v449 = vadd.f32 %v447, %v448
    %v450 = vrot.slane %v449, 1
    %v451 = vadd.f32 %v449, %v450
    %v452 = vmul.f32 %v444, 0.16666667
    %v453 = vmul.f32 %v451, 0.16666667
    %v454 = vmax.f32 %v137, %v140
    %v455 = vmax.f32 %v158, %v161
    %v456 = vadd.f32 %v137, %v140
    %v457 = vadd.f32 %v158, %v161
    %v458 = vmax.f32 %v454, %v143
    %v459 = vmax.f32 %v455, %v164
    %v460 = vadd.f32 %v456, %v143
    %v461 = vadd.f32 %v457, %v164
    %v462 = vsel %vm173, %v458, -inf
    %v463 = vrot.slane %v462, 4
    %v464 = vmax.f32 %v462, %v463
    %v465 = vrot.slane %v464, 2
    %v466 = vmax.f32 %v464, %v465
    %v467 = vrot.slane %v466, 1
    %v468 = vmax.f32 %v466, %v467
    %v469 = vsel %vm173, %v459, -inf
    %v470 = vrot.slane %v469, 4
    %v471 = vmax.f32 %v469, %v470
    %v472 = vrot.slane %v471, 2
    %v473 = vmax.f32 %v471, %v472
    %v474 = vrot.slane %v473, 1
    %v475 = vmax.f32 %v473, %v474
    %v476 = vsel %vm173, %v460, 0.0
    %v477 = vrot.slane %v476, 4
    %v478 = vadd.f32 %v476, %v477
    %v479 = vrot.slane %v478, 2
    %v480 = vadd.f32 %v478, %v479
    %v481 = vrot.slane %v480, 1
    %v482 = vadd.f32 %v480, %v481
    %v483 = vsel %vm173, %v461, 0.0
    %v484 = vrot.slane %v483, 4
    %v485 = vadd.f32 %v483, %v484
    %v486 = vrot.slane %v485, 2
    %v487 = vadd.f32 %v485, %v486
    %v488 = vrot.slane %v487, 1
    %v489 = vadd.f32 %v487, %v488
    %v490 = vmul.f32 %v482, 0.16666667
    %v491 = vmul.f32 %v489, 0.16666667
    %v492 = vsel %vm204, %v458, -inf
    %v493 = vrot.slane %v492, 4
    %v494 = vmax.f32 %v492, %v493
    %v495 = vrot.slane %v494, 2
    %v496 = vmax.f32 %v494, %v495
    %v497 = vrot.slane %v496, 1
    %v498 = vmax.f32 %v496, %v497
    %v499 = vsel %vm204, %v459, -inf
    %v500 = vrot.slane %v499, 4
    %v501 = vmax.f32 %v499, %v500
    %v502 = vrot.slane %v501, 2
    %v503 = vmax.f32 %v501, %v502
    %v504 = vrot.slane %v503, 1
    %v505 = vmax.f32 %v503, %v504
    %v508 = vrot.slane %v460, 1
    %v509 = vrot.slane %v461, 1
    %v512 = vsel %vm225, %v508, 0.0
    %v513 = vrot.slane %v512, 4
    %v514 = vadd.f32 %v512, %v513
    %v515 = vrot.slane %v514, 2
    %v516 = vadd.f32 %v514, %v515
    %v517 = vrot.slane %v516, 1
    %v518 = vadd.f32 %v516, %v517
    %v519 = vsel %vm225, %v509, 0.0
    %v520 = vrot.slane %v519, 4
    %v521 = vadd.f32 %v519, %v520
    %v522 = vrot.slane %v521, 2
    %v523 = vadd.f32 %v521, %v522
    %v524 = vrot.slane %v523, 1
    %v525 = vadd.f32 %v523, %v524
    %v526 = vmul.f32 %v518, 0.11111111
    %v527 = vmul.f32 %v525, 0.11111111
    %v528 = vsel %vm242, %v458, -inf
    %v529 = vrot.slane %v528, 4
    %v530 = vmax.f32 %v528, %v529
    %v531 = vrot.slane %v530, 2
    %v532 = vmax.f32 %v530, %v531
    %v533 = vrot.slane %v532, 1
    %v534 = vmax.f32 %v532, %v533
    %v535 = vsel %vm242, %v459, -inf
    %v536 = vrot.slane %v535, 4
    %v537 = vmax.f32 %v535, %v536
    %v538 = vrot.slane %v537, 2
    %v539 = vmax.f32 %v537, %v538
    %v540 = vrot.slane %v539, 1
    %v541 = vmax.f32 %v539, %v540
    %v542 = vrot.slane %v460, 3
    %v543 = vrot.slane %v461, 3
    %v546 = vsel %vm225, %v542, 0.0
    %v547 = vrot.slane %v546, 4
    %v548 = vadd.f32 %v546, %v547
    %v549 = vrot.slane %v548, 2
    %v550 = vadd.f32 %v548, %v549
    %v551 = vrot.slane %v550, 1
    %v552 = vadd.f32 %v550, %v551
    %v553 = vsel %vm225, %v543, 0.0
    %v554 = vrot.slane %v553, 4
    %v555 = vadd.f32 %v553, %v554
    %v556 = vrot.slane %v555, 2
    %v557 = vadd.f32 %v555, %v556
    %v558 = vrot.slane %v557, 1
    %v559 = vadd.f32 %v557, %v558
    %v560 = vmul.f32 %v552, 0.11111111
    %v561 = vmul.f32 %v559, 0.11111111
    %v562 = vsel %vm277, %v458, -inf
    %v563 = vrot.slane %v562, 4
    %v564 = vmax.f32 %v562, %v563
    %v565 = vrot.slane %v564, 2
    %v566 = vmax.f32 %v564, %v565
    %v567 = vrot.slane %v566, 1
    %v568 = vmax.f32 %v566, %v567
    %v569 = vsel %vm277, %v459, -inf
    %v570 = vrot.slane %v569, 4
    %v571 = vmax.f32 %v569, %v570
    %v572 = vrot.slane %v571, 2
    %v573 = vmax.f32 %v571, %v572
    %v574 = vrot.slane %v573, 1
    %v575 = vmax.f32 %v573, %v574
    %v576 = vrot.slane %v460, 5
    %v577 = vrot.slane %v461, 5
    %v580 = vsel %vm173, %v576, 0.0
    %v581 = vrot.slane %v580, 4
    %v582 = vadd.f32 %v580, %v581
    %v583 = vrot.slane %v582, 2
    %v584 = vadd.f32 %v582, %v583
    %v585 = vrot.slane %v584, 1
    %v586 = vadd.f32 %v584, %v585
    %v587 = vsel %vm173, %v577, 0.0
    %v588 = vrot.slane %v587, 4
    %v589 = vadd.f32 %v587, %v588
    %v590 = vrot.slane %v589, 2
    %v591 = vadd.f32 %v589, %v590
    %v592 = vrot.slane %v591, 1
    %v593 = vadd.f32 %v591, %v592
    %v594 = vmul.f32 %v586, 0.16666667
    %v595 = vmul.f32 %v593, 0.16666667
    %v596 = vmax.f32 %v143, %v146
    %v597 = vmax.f32 %v164, %v167
    %v598 = vadd.f32 %v143, %v146
    %v599 = vadd.f32 %v164, %v167
    %v600 = vsel %vm173, %v596, -inf
    %v601 = vrot.slane %v600, 4
    %v602 = vmax.f32 %v600, %v601
    %v603 = vrot.slane %v602, 2
    %v604 = vmax.f32 %v602, %v603
    %v605 = vrot.slane %v604, 1
    %v606 = vmax.f32 %v604, %v605
    %v607 = vsel %vm173, %v597, -inf
    %v608 = vrot.slane %v607, 4
    %v609 = vmax.f32 %v607, %v608
    %v610 = vrot.slane %v609, 2
    %v611 = vmax.f32 %v609, %v610
    %v612 = vrot.slane %v611, 1
    %v613 = vmax.f32 %v611, %v612
    %v614 = vsel %vm173, %v598, 0.0
    %v615 = vrot.slane %v614, 4
    %v616 = vadd.f32 %v614, %v615
    %v617 = vrot.slane %v616, 2
    %v618 = vadd.f32 %v616, %v617
    %v619 = vrot.slane %v618, 1
    %v620 = vadd.f32 %v618, %v619
    %v621 = vsel %vm173, %v599, 0.0
    %v622 = vrot.slane %v621, 4
    %v623 = vadd.f32 %v621, %v622
    %v624 = vrot.slane %v623, 2
    %v625 = vadd.f32 %v623, %v624
    %v626 = vrot.slane %v625, 1
    %v627 = vadd.f32 %v625, %v626
    %v628 = vmul.f32 %v620, 0.25
    %v629 = vmul.f32 %v627, 0.25
    %v630 = vsel %vm204, %v596, -inf
    %v631 = vrot.slane %v630, 4
    %v632 = vmax.f32 %v630, %v631
    %v633 = vrot.slane %v632, 2
    %v634 = vmax.f32 %v632, %v633
    %v635 = vrot.slane %v634, 1
    %v636 = vmax.f32 %v634, %v635
    %v637 = vsel %vm204, %v597, -inf
    %v638 = vrot.slane %v637, 4
    %v639 = vmax.f32 %v637, %v638
    %v640 = vrot.slane %v639, 2
    %v641 = vmax.f32 %v639, %v640
    %v642 = vrot.slane %v641, 1
    %v643 = vmax.f32 %v641, %v642
    %v646 = vrot.slane %v598, 1
    %v647 = vrot.slane %v599, 1
    %v650 = vsel %vm225, %v646, 0.0
    %v651 = vrot.slane %v650, 4
    %v652 = vadd.f32 %v650, %v651
    %v653 = vrot.slane %v652, 2
    %v654 = vadd.f32 %v652, %v653
    %v655 = vrot.slane %v654, 1
    %v656 = vadd.f32 %v654, %v655
    %v657 = vsel %vm225, %v647, 0.0
    %v658 = vrot.slane %v657, 4
    %v659 = vadd.f32 %v657, %v658
    %v660 = vrot.slane %v659, 2
    %v661 = vadd.f32 %v659, %v660
    %v662 = vrot.slane %v661, 1
    %v663 = vadd.f32 %v661, %v662
    %v664 = vmul.f32 %v656, 0.16666667
    %v665 = vmul.f32 %v663, 0.16666667
    %v666 = vsel %vm242, %v596, -inf
    %v667 = vrot.slane %v666, 4
    %v668 = vmax.f32 %v666, %v667
    %v669 = vrot.slane %v668, 2
    %v670 = vmax.f32 %v668, %v669
    %v671 = vrot.slane %v670, 1
    %v672 = vmax.f32 %v670, %v671
    %v673 = vsel %vm242, %v597, -inf
    %v674 = vrot.slane %v673, 4
    %v675 = vmax.f32 %v673, %v674
    %v676 = vrot.slane %v675, 2
    %v677 = vmax.f32 %v675, %v676
    %v678 = vrot.slane %v677, 1
    %v679 = vmax.f32 %v677, %v678
    %v680 = vrot.slane %v598, 3
    %v681 = vrot.slane %v599, 3
    %v684 = vsel %vm225, %v680, 0.0
    %v685 = vrot.slane %v684, 4
    %v686 = vadd.f32 %v684, %v685
    %v687 = vrot.slane %v686, 2
    %v688 = vadd.f32 %v686, %v687
    %v689 = vrot.slane %v688, 1
    %v690 = vadd.f32 %v688, %v689
    %v691 = vsel %vm225, %v681, 0.0
    %v692 = vrot.slane %v691, 4
    %v693 = vadd.f32 %v691, %v692
    %v694 = vrot.slane %v693, 2
    %v695 = vadd.f32 %v693, %v694
    %v696 = vrot.slane %v695, 1
    %v697 = vadd.f32 %v695, %v696
    %v698 = vmul.f32 %v690, 0.16666667
    %v699 = vmul.f32 %v697, 0.16666667
    %v700 = vsel %vm277, %v596, -inf
    %v701 = vrot.slane %v700, 4
    %v702 = vmax.f32 %v700, %v701
    %v703 = vrot.slane %v702, 2
    %v704 = vmax.f32 %v702, %v703
    %v705 = vrot.slane %v704, 1
    %v706 = vmax.f32 %v704, %v705
    %v707 = vsel %vm277, %v597, -inf
    %v708 = vrot.slane %v707, 4
    %v709 = vmax.f32 %v707, %v708
    %v710 = vrot.slane %v709, 2
    %v711 = vmax.f32 %v709, %v710
    %v712 = vrot.slane %v711, 1
    %v713 = vmax.f32 %v711, %v712
    %v714 = vrot.slane %v598, 5
    %v715 = vrot.slane %v599, 5
    %v718 = vsel %vm173, %v714, 0.0
    %v719 = vrot.slane %v718, 4
    %v720 = vadd.f32 %v718, %v719
    %v721 = vrot.slane %v720, 2
    %v722 = vadd.f32 %v720, %v721
    %v723 = vrot.slane %v722, 1
    %v724 = vadd.f32 %v722, %v723
    %v725 = vsel %vm173, %v715, 0.0
    %v726 = vrot.slane %v725, 4
    %v727 = vadd.f32 %v725, %v726
    %v728 = vrot.slane %v727, 2
    %v729 = vadd.f32 %v727, %v728
    %v730 = vrot.slane %v729, 1
    %v731 = vadd.f32 %v729, %v730
    %v732 = vmul.f32 %v724, 0.25
    %v733 = vmul.f32 %v731, 0.25
    %vm736 = vcmask 1041409
    %v737 = vsel %vm736, %v187, %v180
    %v741 = vsel %vm736, %v218, %v211
    %742 = vrot.lane.b32.xlu0 %v741, 4
    %v743 = vpop.permute.xlu0 %742
    %v747 = vsel %vm736, %v256, %v249
    %748 = vrot.lane.b32.xlu0 %v747, 8
    %v749 = vpop.permute.xlu0 %748
    %v753 = vsel %vm736, %v291, %v284
    %754 = vrot.lane.b32.xlu0 %v753, 12
    %v755 = vpop.permute.xlu0 %754
    %v759 = vsel %vm736, %v333, %v326
    %760 = vrot.lane.b32.xlu0 %v759, 16
    %v761 = vpop.permute.xlu0 %760
    %v765 = vsel %vm736, %v363, %v356
    %766 = vrot.lane.b32.xlu0 %v765, 20
    %v767 = vpop.permute.xlu0 %766
    %v771 = vsel %vm736, %v399, %v392
    %772 = vrot.lane.b32.xlu0 %v771, 24
    %v773 = vpop.permute.xlu0 %772
    %v777 = vsel %vm736, %v433, %v426
    %778 = vrot.lane.b32.xlu0 %v777, 28
    %v779 = vpop.permute.xlu0 %778
    %v783 = vsel %vm736, %v475, %v468
    %784 = vrot.lane.b32.xlu0 %v783, 32
    %v785 = vpop.permute.xlu0 %784
    %v789 = vsel %vm736, %v505, %v498
    %790 = vrot.lane.b32.xlu0 %v789, 36
    %v791 = vpop.permute.xlu0 %790
    %v795 = vsel %vm736, %v541, %v534
    %796 = vrot.lane.b32.xlu0 %v795, 40
    %v797 = vpop.permute.xlu0 %796
    %v801 = vsel %vm736, %v575, %v568
    %802 = vrot.lane.b32.xlu0 %v801, 44
    %v803 = vpop.permute.xlu0 %802
    %v807 = vsel %vm736, %v613, %v606
    %808 = vrot.lane.b32.xlu0 %v807, 48
    %v809 = vpop.permute.xlu0 %808
    %v813 = vsel %vm736, %v643, %v636
    %814 = vrot.lane.b32.xlu0 %v813, 52
    %v815 = vpop.permute.xlu0 %814
    %v819 = vsel %vm736, %v679, %v672
    %820 = vrot.lane.b32.xlu0 %v819, 56
    %v821 = vpop.permute.xlu0 %820
    %v825 = vsel %vm736, %v713, %v706
    %826 = vrot.lane.b32.xlu0 %v825, 60
    %v827 = vpop.permute.xlu0 %826
    %vm829 = vcmask 31744
    %v830 = vsel %vm829, %v737, %v743
    %vm831 = vcmask 64512
    %v832 = vsel %vm831, %v830, %v749
    %vm833 = vcmask 97280
    %v834 = vsel %vm833, %v832, %v755
    %vm835 = vcmask 130048
    %v836 = vsel %vm835, %v834, %v761
    %vm837 = vcmask 162816
    %v838 = vsel %vm837, %v836, %v767
    %vm839 = vcmask 195584
    %v840 = vsel %vm839, %v838, %v773
    %vm841 = vcmask 228352
    %v842 = vsel %vm841, %v840, %v779
    %vm843 = vcmask 261120
    %v844 = vsel %vm843, %v842, %v785
    %vm845 = vcmask 293888
    %v846 = vsel %vm845, %v844, %v791
    %vm847 = vcmask 326656
    %v848 = vsel %vm847, %v846, %v797
    %vm849 = vcmask 359424
    %v850 = vsel %vm849, %v848, %v803
    %vm851 = vcmask 392192
    %v852 = vsel %vm851, %v850, %v809
    %vm853 = vcmask 424960
    %v854 = vsel %vm853, %v852, %v815
    %vm855 = vcmask 457728
    %v856 = vsel %vm855, %v854, %v821
    %vm857 = vcmask 490496
    %v858 = vsel %vm857, %v856, %v827
    %v861 = vsel %vm736, %v203, %v202
    %v865 = vsel %vm736, %v241, %v240
    %866 = vrot.lane.b32.xlu0 %v865, 4
    %v867 = vpop.permute.xlu0 %866
    %v871 = vsel %vm736, %v276, %v275
    %872 = vrot.lane.b32.xlu0 %v871, 8
    %v873 = vpop.permute.xlu0 %872
    %v877 = vsel %vm736, %v311, %v310
    %878 = vrot.lane.b32.xlu0 %v877, 12
    %v879 = vpop.permute.xlu0 %878
    %v883 = vsel %vm736, %v349, %v348
    %884 = vrot.lane.b32.xlu0 %v883, 16
    %v885 = vpop.permute.xlu0 %884
    %v889 = vsel %vm736, %v385, %v384
    %890 = vrot.lane.b32.xlu0 %v889, 20
    %v891 = vpop.permute.xlu0 %890
    %v895 = vsel %vm736, %v419, %v418
    %896 = vrot.lane.b32.xlu0 %v895, 24
    %v897 = vpop.permute.xlu0 %896
    %v901 = vsel %vm736, %v453, %v452
    %902 = vrot.lane.b32.xlu0 %v901, 28
    %v903 = vpop.permute.xlu0 %902
    %v907 = vsel %vm736, %v491, %v490
    %908 = vrot.lane.b32.xlu0 %v907, 32
    %v909 = vpop.permute.xlu0 %908
    %v913 = vsel %vm736, %v527, %v526
    %914 = vrot.lane.b32.xlu0 %v913, 36
    %v915 = vpop.permute.xlu0 %914
    %v919 = vsel %vm736, %v561, %v560
    %920 = vrot.lane.b32.xlu0 %v919, 40
    %v921 = vpop.permute.xlu0 %920
    %v925 = vsel %vm736, %v595, %v594
    %926 = vrot.lane.b32.xlu0 %v925, 44
    %v927 = vpop.permute.xlu0 %926
    %v931 = vsel %vm736, %v629, %v628
    %932 = vrot.lane.b32.xlu0 %v931, 48
    %v933 = vpop.permute.xlu0 %932
    %v937 = vsel %vm736, %v665, %v664
    %938 = vrot.lane.b32.xlu0 %v937, 52
    %v939 = vpop.permute.xlu0 %938
    %v943 = vsel %vm736, %v699, %v698
    %944 = vrot.lane.b32.xlu0 %v943, 56
    %v945 = vpop.permute.xlu0 %944
    %v949 = vsel %vm736, %v733, %v732
    %950 = vrot.lane.b32.xlu0 %v949, 60
    %v951 = vpop.permute.xlu0 %950
    %v953 = vsel %vm829, %v861, %v867
    %v954 = vsel %vm831, %v953, %v873
    %v955 = vsel %vm833, %v954, %v879
    %v956 = vsel %vm835, %v955, %v885
    %v957 = vsel %vm837, %v956, %v891
    %v958 = vsel %vm839, %v957, %v897
    %v959 = vsel %vm841, %v958, %v903
    %v960 = vsel %vm843, %v959, %v909
    %v961 = vsel %vm845, %v960, %v915
    %v962 = vsel %vm847, %v961, %v921
    %v963 = vsel %vm849, %v962, %v927
    %v964 = vsel %vm851, %v963, %v933
    %v965 = vsel %vm853, %v964, %v939
    %v966 = vsel %vm855, %v965, %v945
    %v967 = vsel %vm857, %v966, %v951
    %v968 = vld [vmem:[#allocation2] sm:$0x1]
    %v970 = vperm.slane %v968, 0
    %971 = vset.pattern.permute.xlu0 0
    %972 = vperm.xlu0 %971, %v970
    %v973 = vpop.permute.xlu0 %972
    %v975 = vmul.f32 %v973, %v858
    %v976 = vsub.f32 1.0, %v968
    %v978 = vperm.slane %v976, 0
    %979 = vset.pattern.permute.xlu0 0
    %980 = vperm.xlu0 %979, %v978
    %v981 = vpop.permute.xlu0 %980
    %v983 = vmul.f32 %v981, %v967
    %v984 = vadd.f32 %v975, %v983
    %v985 = vld [vmem:[%s4] sm:$0xff]
    %v986 = vld [vmem:[%s4 + $0x8] sm:$0xff]
    %v987 = vld [vmem:[%s4 + $0x10] sm:$0xff]
    %v988 = vld [vmem:[%s4 + $0x18] sm:$0xff]
    %v989 = vld [vmem:[%s4 + $0x20] sm:$0xff]
    %v990 = vld [vmem:[%s4 + $0x28] sm:$0xff]
    %v991 = vld [vmem:[%s4 + $0x30] sm:$0xff]
    %v992 = vld [vmem:[%s4 + $0x38] sm:$0xff]
    %v993 = vld [vmem:[%s5] sm:$0x1]
    %v995 = vperm.slane %v993, 0
    %vm997 = vcmask 523264
    %v999 = vsel %vm997, %v984, 0
    %1001 = vmatpush.msra.mxu0 0.0
    %1002 = vmatpush.msra.mxu0 0.0
    %1003 = vmatpush.msra.mxu0 0.0
    %1004 = vmatpush.msra.mxu0 0.0
    %1005 = vmatpush.msra.mxu0 0.0
    %1006 = vmatpush.msra.mxu0 0.0
    %1007 = vmatpush.msra.mxu0 0.0
    %1008 = vmatpush.msra.mxu0 0.0
    %1009 = vmatpush.msra.mxu0 %v992
    %1010 = vmatpush.msra.mxu0 %v991
    %1011 = vmatpush.msra.mxu0 %v990
    %1012 = vmatpush.msra.mxu0 %v989
    %1013 = vmatpush.msra.mxu0 %v988
    %1014 = vmatpush.msra.mxu0 %v987
    %1015 = vmatpush.msra.mxu0 %v986
    %1016 = vmatpush.msra.mxu0 %v985
    %1017 = vmatmul.f32.gmra.mxu0 %v999
    %v1018 = vpop.f32.mrf.mxu0
    %v1019 = vadd.f32 %v995, %v1018
    %1020 = vdwg.mxu0
    %1021 = vst [vmem:[#allocation3] sm:$0x3] %v1019
    // Predicated region
    $region26: #{conv_head_forward.1} parent=1 // pred_check
      _
    $region27: #{conv_head_forward.1} parent=1 // pred_check_branch
      %1023 = sbr.rel (0) target = $region29
    $region28: #{conv_head_forward.1} parent=1 // pred_region
      %1025 = vsyncadd [#allocation4], 0
      %s1027 = sshll.u32 [#allocation3], 4
      %s1028 = int_to_ptr.vmem [resolvable:$true] %s1027
      %s1029 = sshll.u32 %s6, 4
      %s1030 = int_to_ptr.hbm [resolvable:$true] %s1029
      %1032 = dma.vmem_to_hbm [thread:$0]  %s1028, 32, %s1030, [#allocation4]
    $region29: #{conv_head_forward.1} parent=1 // pred_fallthru
      _
    // Predicated region
    $region30: #{conv_head_forward.1} parent=1 // pred_check
      _
    $region31: #{conv_head_forward.1} parent=1 // pred_check_branch
      %1034 = sbr.rel (0) target = $region33
    $region32: #{conv_head_forward.1} parent=1 // pred_region
      %1036 = dma.done [#allocation4], 32
    $region33: #{conv_head_forward.1} parent=1 // pred_fallthru
      _
    %1037 = vsyncpa [#allocation4], 1

</llo_original>
